<compile_context>
chip_gen: v5e
topology: v5e:2x2
jax: 0.10.0
libtpu: 0.0.40
codegen_flags: <defaults>
</compile_context>

<pallas_src>
import functools

import jax
import jax.numpy as jnp
from jax import lax
from jax.experimental import pallas as pl
from jax.experimental.pallas import tpu as pltpu


def _vmem_limit_bytes():
    """~75% of physical VMEM: 48 MiB on v7x (64 MiB/TC), 96 MiB on v5e/v6e (128 MiB)."""
    try:
        cap = int(pltpu.get_tpu_info().vmem_capacity_bytes)
    except Exception:
        cap = 64 * 1024 * 1024
    return max(32 * 1024 * 1024, min(cap * 3 // 4, 96 * 1024 * 1024))


def _layernorm(y, g, b, eps=1e-5):
    mu = jnp.mean(y, axis=-1, keepdims=True)
    var = jnp.mean(jnp.square(y - mu), axis=-1, keepdims=True)
    return (y - mu) * lax.rsqrt(var + eps) * g + b


def _const_spec(arr):
    """Full-array BlockSpec with a constant index map (fetched once, reused every step)."""
    nd = arr.ndim
    return pl.BlockSpec(arr.shape, lambda *_: (0,) * nd)


# ---------------------------------------------------------------------------
# Kernel 1: fused Q/K/V projection with a single (E, 3E) weight.
# The 1/sqrt(E) scale is folded into Q.  grid = (B, n_row_tiles).
# ---------------------------------------------------------------------------
def _qkv_proj_kernel(x_ref, wqkv_ref, q_ref, k_ref, v_ref, *, scale, compute_dtype):
    E = q_ref.shape[-1]
    x = x_ref[0].astype(compute_dtype)                                  # (PT, E)
    qkv = jnp.dot(x, wqkv_ref[...].astype(compute_dtype),
                  preferred_element_type=jnp.float32)                   # (PT, 3E), f32 acc
    q_ref[0] = (qkv[:, :E] * scale).astype(q_ref.dtype)
    k_ref[0] = qkv[:, E:2 * E].astype(k_ref.dtype)
    v_ref[0] = qkv[:, 2 * E:].astype(v_ref.dtype)


# ---------------------------------------------------------------------------
# Kernel 2: flash-style causal attention + unify + residual + LN1 on one (T, E)
# query tile; grid = (batch, q_tile, kv_tile), kv is the reduction ("arbitrary") axis.
# ---------------------------------------------------------------------------
def _attn_kernel(x_ref, q_ref, k_ref, v_ref, wu_ref, bu_ref, g1_ref, be1_ref,
                 o_ref, m_ref, l_ref, acc_ref, *, heads, compute_dtype):
    qi = pl.program_id(1)
    ki = pl.program_id(2)
    n_kv = pl.num_programs(2)

    T = q_ref.shape[1]
    E = q_ref.shape[2]
    hs = E // heads

    @pl.when(ki == 0)
    def _init():
        m_ref[...] = jnp.full(m_ref.shape, -jnp.inf, dtype=m_ref.dtype)
        l_ref[...] = jnp.zeros(l_ref.shape, dtype=l_ref.dtype)
        acc_ref[...] = jnp.zeros(acc_ref.shape, dtype=acc_ref.dtype)

    def _accumulate(masked):
        q_t = q_ref[0].astype(compute_dtype)      # (T, E), already scaled by 1/sqrt(E)
        k_t = k_ref[0].astype(compute_dtype)
        v_t = v_ref[0].astype(compute_dtype)
        if masked:
            # Intra-tile causal mask only needed on the diagonal tile.
            row = lax.broadcasted_iota(jnp.int32, (T, T), 0)
            col = lax.broadcasted_iota(jnp.int32, (T, T), 1)
            keep = col <= row
        # heads is small: static unroll; each head's (T,T) temporaries are dead before
        # the next head starts (self-contained per-head body bounds live ranges).
        for h in range(heads):
            qh = q_t[:, h * hs:(h + 1) * hs]
            kh = k_t[:, h * hs:(h + 1) * hs]
            vh = v_t[:, h * hs:(h + 1) * hs]
            # Contract on the head dim directly (no kh.T relayout / XLU transpose).
            sc = lax.dot_general(qh, kh, (((1,), (1,)), ((), ())),
                                 preferred_element_type=jnp.float32)   # (T, T) f32
            if masked:
                sc = jnp.where(keep, sc, -jnp.inf)
            m_prev = m_ref[h]                                           # (T, 1)
            m_new = jnp.maximum(m_prev, jnp.max(sc, axis=-1, keepdims=True))
            alpha = jnp.exp(m_prev - m_new)
            p = jnp.exp(sc - m_new)
            l_ref[h] = alpha * l_ref[h] + jnp.sum(p, axis=-1, keepdims=True)
            acc_ref[h] = alpha * acc_ref[h] + jnp.dot(
                p.astype(compute_dtype), vh, preferred_element_type=jnp.float32)
            m_ref[h] = m_new

    @pl.when(ki < qi)            # strictly-past K/V tile: unmasked path
    def _attend_past():
        _accumulate(masked=False)

    @pl.when(ki == qi)           # diagonal tile: masked path
    def _attend_diag():
        _accumulate(masked=True)
    # ki > qi: fully-future tile -> compute skipped; its K/V DMA is also skipped because
    # the k/v index maps clamp the block index to min(ki, qi) (block stays resident).

    @pl.when(ki == n_kv - 1)
    def _finalize():
        x_t = x_ref[0].astype(jnp.float32)                              # residual input
        # Per-head softmax normalization on the small (T, hs) accumulators (EUP reciprocal),
        # then ONE (T, E) @ (E, E) unify matmul with full contraction depth.
        o = jnp.concatenate(
            [acc_ref[h] * pl.reciprocal(l_ref[h], approx=True) for h in range(heads)],
            axis=-1)                                                    # (T, E) f32
        attended = x_t + bu_ref[...] + jnp.dot(
            o.astype(compute_dtype), wu_ref[...].astype(compute_dtype),
            preferred_element_type=jnp.float32)
        o_ref[0] = _layernorm(attended, g1_ref[...], be1_ref[...]).astype(o_ref.dtype)


# ---------------------------------------------------------------------------
# Kernel 3: FFN (E -> 4E -> E, ReLU) + residual + LN2, with the 4E hidden dim tiled
# as a reduction axis so w1/w2 tiles are streamed instead of pinned in VMEM.
# grid = (batch, row_tile, hidden_tile).
# ---------------------------------------------------------------------------
def _ffn_kernel(x1_ref, w1_ref, bf1_ref, w2_ref, bf2_ref, g2_ref, be2_ref,
                o_ref, acc_ref, *, compute_dtype):
    j = pl.program_id(2)

    @pl.when(j == 0)
    def _init():
        acc_ref[...] = jnp.zeros(acc_ref.shape, dtype=acc_ref.dtype)

    x1 = x1_ref[0].astype(jnp.float32)                                  # (T, E), resident over j
    h = jnp.dot(x1.astype(compute_dtype), w1_ref[...].astype(compute_dtype),
                preferred_element_type=jnp.float32) + bf1_ref[...]      # (T, TH)
    h = jnp.maximum(h, 0.0)                                             # ReLU (valid per hidden tile)
    acc_ref[...] += jnp.dot(h.astype(compute_dtype), w2_ref[...].astype(compute_dtype),
                            preferred_element_type=jnp.float32)         # (T, E)

    @pl.when(j == pl.num_programs(2) - 1)
    def _finalize():
        y = acc_ref[...] + bf2_ref[...] + x1
        o_ref[0] = _layernorm(y, g2_ref[...], be2_ref[...]).astype(o_ref.dtype)


# ---------------------------------------------------------------------------
# Wrapper
# ---------------------------------------------------------------------------
def transformer_block(x, params, heads, *, seq_tile=128, hidden_tile=None,
                      compute_dtype=jnp.bfloat16):
    B, S, E = x.shape
    (wq, wk, wv, wu, bu, g1, be1, w1, bf1, w2, bf2, g2, be2) = params
    assert E % heads == 0
    hs = E // heads

    T = min(seq_tile, S)
    assert S % T == 0, "seq_len must be divisible by the sequence tile"
    n_t = S // T

    H4 = 4 * E
    if hidden_tile is None:
        hidden_tile = 512 if (H4 % 512 == 0 and H4 > 512) else H4
    TH = hidden_tile
    assert H4 % TH == 0 and (TH % 128 == 0 or TH == H4)
    n_h = H4 // TH

    # Larger independent row tile for the (cheap-per-tile) projection kernel.
    PT = next((t for t in (512, 256, 128, 64, 32, 16, 8) if t <= S and S % t == 0), T)
    n_pt = S // PT

    scale = 1.0 / (float(E) ** 0.5)
    vmem_limit = _vmem_limit_bytes()

    # Weights cast once on the host side: halves weight DMA/VMEM in bf16 mode, identical
    # numerics to casting per-use inside the kernel.
    wqkv = jnp.concatenate([wq, wk, wv], axis=1).astype(compute_dtype)   # (E, 3E)
    wu_c = wu.astype(compute_dtype)
    w1_c = w1.astype(compute_dtype)
    w2_c = w2.astype(compute_dtype)

    # ---- Kernel 1: fused Q/K/V projection (Q pre-scaled), q/k/v stored in compute_dtype ----
    q, k, v = pl.pallas_call(
        functools.partial(_qkv_proj_kernel, scale=scale, compute_dtype=compute_dtype),
        out_shape=(jax.ShapeDtypeStruct((B, S, E), compute_dtype),
                   jax.ShapeDtypeStruct((B, S, E), compute_dtype),
                   jax.ShapeDtypeStruct((B, S, E), compute_dtype)),
        grid_spec=pltpu.PrefetchScalarGridSpec(
            num_scalar_prefetch=0,
            grid=(B, n_pt),
            in_specs=[pl.BlockSpec((1, PT, E), lambda b, i: (b, i, 0)),
                      _const_spec(wqkv)],
            out_specs=[pl.BlockSpec((1, PT, E), lambda b, i: (b, i, 0)),
                       pl.BlockSpec((1, PT, E), lambda b, i: (b, i, 0)),
                       pl.BlockSpec((1, PT, E), lambda b, i: (b, i, 0))],
        ),
        compiler_params=pltpu.CompilerParams(
            dimension_semantics=("parallel", "parallel"),
            vmem_limit_bytes=vmem_limit),
    )(x, wqkv)

    # ---- Kernel 2: flash attention + unify + residual + LN1 ----
    x1 = pl.pallas_call(
        functools.partial(_attn_kernel, heads=heads, compute_dtype=compute_dtype),
        out_shape=jax.ShapeDtypeStruct((B, S, E), x.dtype),
        grid_spec=pltpu.PrefetchScalarGridSpec(
            num_scalar_prefetch=0,
            grid=(B, n_t, n_t),
            in_specs=[
                pl.BlockSpec((1, T, E), lambda b, qi, ki: (b, qi, 0)),                   # x (residual)
                pl.BlockSpec((1, T, E), lambda b, qi, ki: (b, qi, 0)),                   # q tile
                # Clamp: fully-masked (future) K/V tiles alias the resident block -> no DMA.
                pl.BlockSpec((1, T, E), lambda b, qi, ki: (b, jnp.minimum(ki, qi), 0)),  # k tile
                pl.BlockSpec((1, T, E), lambda b, qi, ki: (b, jnp.minimum(ki, qi), 0)),  # v tile
                _const_spec(wu_c), _const_spec(bu),
                _const_spec(g1), _const_spec(be1),
            ],
            out_specs=pl.BlockSpec((1, T, E), lambda b, qi, ki: (b, qi, 0)),
            scratch_shapes=[
                pltpu.VMEM((heads, T, 1), jnp.float32),    # running max  m
                pltpu.VMEM((heads, T, 1), jnp.float32),    # running sum  l
                pltpu.VMEM((heads, T, hs), jnp.float32),   # running PV accumulator
            ],
        ),
        compiler_params=pltpu.CompilerParams(
            dimension_semantics=("parallel", "parallel", "arbitrary"),
            vmem_limit_bytes=vmem_limit),
    )(x, q, k, v, wu_c, bu, g1, be1)

    # ---- Kernel 3: FFN (hidden dim tiled) + residual + LN2 ----
    out = pl.pallas_call(
        functools.partial(_ffn_kernel, compute_dtype=compute_dtype),
        out_shape=jax.ShapeDtypeStruct((B, S, E), x.dtype),
        grid_spec=pltpu.PrefetchScalarGridSpec(
            num_scalar_prefetch=0,
            grid=(B, n_t, n_h),
            in_specs=[
                pl.BlockSpec((1, T, E), lambda b, i, j: (b, i, 0)),   # x1, resident over j
                pl.BlockSpec((E, TH), lambda b, i, j: (0, j)),        # w1 hidden tile
                pl.BlockSpec((1, TH), lambda b, i, j: (0, j)),        # bf1 hidden tile
                pl.BlockSpec((TH, E), lambda b, i, j: (j, 0)),        # w2 hidden tile
                _const_spec(bf2), _const_spec(g2), _const_spec(be2),
            ],
            out_specs=pl.BlockSpec((1, T, E), lambda b, i, j: (b, i, 0)),
            scratch_shapes=[pltpu.VMEM((T, E), jnp.float32)],
        ),
        compiler_params=pltpu.CompilerParams(
            dimension_semantics=("parallel", "parallel", "arbitrary"),
            vmem_limit_bytes=vmem_limit),
    )(x1, w1_c, bf1, w2_c, bf2, g2, be2)
    return out


# ---------------------------------------------------------------------------
# Pure-JAX reference mirroring the PyTorch forward exactly.
# ---------------------------------------------------------------------------
def transformer_block_ref(x, params, heads):
    (wq, wk, wv, wu, bu, g1, be1, w1, bf1, w2, bf2, g2, be2) = params
    B, S, E = x.shape
    s = E // heads

    q = x @ wq
    k = x @ wk
    v = x @ wv
    q = q.reshape(B, S, heads, s).transpose(0, 2, 1, 3)
    k = k.reshape(B, S, heads, s).transpose(0, 2, 1, 3)
    v = v.reshape(B, S, heads, s).transpose(0, 2, 1, 3)
    dot = jnp.einsum("bhqd,bhkd->bhqk", q, k) / (E ** 0.5)
    row = jnp.arange(S)[:, None]
    col = jnp.arange(S)[None, :]
    dot = jnp.where(col <= row, dot, -jnp.inf)
    attn = jax.nn.softmax(dot, axis=-1)
    out = jnp.einsum("bhqk,bhkd->bhqd", attn, v)
    out = out.transpose(0, 2, 1, 3).reshape(B, S, E)
    attended = out @ wu + bu[0]

    def ln(y, g, b, eps=1e-5):
        mu = jnp.mean(y, axis=-1, keepdims=True)
        var = jnp.mean((y - mu) ** 2, axis=-1, keepdims=True)
        return (y - mu) / jnp.sqrt(var + eps) * g[0] + b[0]

    x1 = ln(attended + x, g1, be1)
    ff = jnp.maximum(x1 @ w1 + bf1[0], 0.0) @ w2 + bf2[0]
    return ln(ff + x1, g2, be2)


def make_params(key, emb_dim):
    E = emb_dim
    ks = jax.random.split(key, 8)
    scale = 0.05
    wq = scale * jax.random.normal(ks[0], (E, E), jnp.float32)
    wk = scale * jax.random.normal(ks[1], (E, E), jnp.float32)
    wv = scale * jax.random.normal(ks[2], (E, E), jnp.float32)
    wu = scale * jax.random.normal(ks[3], (E, E), jnp.float32)
    bu = scale * jax.random.normal(ks[4], (1, E), jnp.float32)
    g1 = jnp.ones((1, E), jnp.float32)
    be1 = jnp.zeros((1, E), jnp.float32)
    w1 = scale * jax.random.normal(ks[5], (E, 4 * E), jnp.float32)
    bf1 = scale * jax.random.normal(ks[6], (1, 4 * E), jnp.float32)
    w2 = scale * jax.random.normal(ks[7], (4 * E, E), jnp.float32)
    bf2 = jnp.zeros((1, E), jnp.float32)
    g2 = jnp.ones((1, E), jnp.float32)
    be2 = jnp.zeros((1, E), jnp.float32)
    return (wq, wk, wv, wu, bu, g1, be1, w1, bf1, w2, bf2, g2, be2)


if __name__ == "__main__":
    key = jax.random.PRNGKey(0)
    # (B, S, E, heads, seq_tile, hidden_tile, compute_dtype, atol, rtol)
    #  - config 1: default bf16 compute path; 2x2 q/kv tiles (online softmax + causal
    #    skip + clamped K/V DMA) and a 2-way tiled FFN hidden reduction.
    #  - config 2: f32 compute path; 4x4 q/kv tiles, tight tolerance vs the f32 reference.
    configs = [
        (2, 32, 64, 4, 16, 128, jnp.bfloat16, 1e-1, 1e-1),
        (2, 32, 32, 4, 8, None, jnp.float32, 2e-3, 2e-3),
    ]
    for (B, S, E, HEADS, T, TH, cdt, atol, rtol) in configs:
        kx, kp, key = jax.random.split(key, 3)
        x = jax.random.normal(kx, (B, S, E), jnp.float32)
        params = make_params(kp, E)

        out = transformer_block(x, params, HEADS, seq_tile=T, hidden_tile=TH,
                                compute_dtype=cdt)
        out = jax.block_until_ready(out)

        ref = transformer_block_ref(x, params, HEADS)
        assert out.shape == (B, S, E)
        out_f32 = out.astype(jnp.float32)
        err = float(jnp.max(jnp.abs(out_f32 - ref)))
        assert jnp.allclose(out_f32, ref, atol=atol, rtol=rtol), (
            f"config {(B, S, E, HEADS, T, TH, cdt)}: max abs err {err}")
    print("KERNEL_OK")
</pallas_src>

<mosaic_0001>
module attributes {stable_mosaic.version = 11 : i64} {
  func.func @_qkv_proj_kernel(%arg0: i32, %arg1: i32, %arg2: memref<1x32x64xf32, #tpu.memory_space<vmem>>, %arg3: memref<64x192xbf16, #tpu.memory_space<vmem>>, %arg4: memref<1x32x64xbf16, #tpu.memory_space<vmem>>, %arg5: memref<1x32x64xbf16, #tpu.memory_space<vmem>>, %arg6: memref<1x32x64xbf16, #tpu.memory_space<vmem>>) attributes {dimension_semantics = [#tpu.dimension_semantics<parallel>, #tpu.dimension_semantics<parallel>], iteration_bounds = array<i64: 2, 1>, scalar_prefetch = 0 : i64, scratch_operands = 0 : i64, tpu.core_type = #tpu.core_type<tc>, window_params = [{transform_indices = @transform_0, window_bounds = array<i64: 1, 32, 64>}, {pipeline_mode = #tpu.pipeline_mode<synchronous>, transform_indices = @transform_1, window_bounds = array<i64: 64, 192>}, {transform_indices = @transform_2, window_bounds = array<i64: 1, 32, 64>}, {transform_indices = @transform_3, window_bounds = array<i64: 1, 32, 64>}, {transform_indices = @transform_4, window_bounds = array<i64: 1, 32, 64>}]} {
    %c0 = arith.constant 0 : index
    %c0_0 = arith.constant 0 : index
    %c0_1 = arith.constant 0 : index
    %0 = vector.load %arg2[%c0, %c0_0, %c0_1] : memref<1x32x64xf32, #tpu.memory_space<vmem>>, vector<1x32x64xf32>
    %1 = vector.shape_cast %0 : vector<1x32x64xf32> to vector<32x64xf32>
    %2 = arith.truncf %1 : vector<32x64xf32> to vector<32x64xbf16>
    %c0_2 = arith.constant 0 : index
    %c0_3 = arith.constant 0 : index
    %3 = vector.load %arg3[%c0_2, %c0_3] : memref<64x192xbf16, #tpu.memory_space<vmem>>, vector<64x192xbf16>
    %cst = arith.constant dense<0.000000e+00> : vector<32x192xf32>
    %4 = tpu.matmul %2, %3, %cst {dimension_numbers = #tpu.dot_dimension_numbers<[1], [0], [0], [1], [0, 0, 1, 1], [], []>} : vector<32x64xbf16>, vector<64x192xbf16>, vector<32x192xf32> -> vector<32x192xf32>
    %5 = vector.extract_strided_slice %4 {offsets = [0, 0], sizes = [32, 64], strides = [1, 1]} : vector<32x192xf32> to vector<32x64xf32>
    %cst_4 = arith.constant 1.250000e-01 : f32
    %6 = vector.broadcast %cst_4 : f32 to vector<32x64xf32>
    %7 = arith.mulf %5, %6 : vector<32x64xf32>
    %8 = arith.truncf %7 : vector<32x64xf32> to vector<32x64xbf16>
    %c0_5 = arith.constant 0 : index
    %c0_6 = arith.constant 0 : index
    %c0_7 = arith.constant 0 : index
    %9 = vector.load %arg4[%c0_5, %c0_6, %c0_7] : memref<1x32x64xbf16, #tpu.memory_space<vmem>>, vector<1x32x64xbf16>
    %10 = vector.shape_cast %9 : vector<1x32x64xbf16> to vector<32x64xbf16>
    %11 = vector.shape_cast %8 : vector<32x64xbf16> to vector<1x32x64xbf16>
    tpu.vector_store %arg4[%c0_5, %c0_6, %c0_7], %11 {strides = array<i32>} : memref<1x32x64xbf16, #tpu.memory_space<vmem>>, vector<1x32x64xbf16>,
    %12 = vector.extract_strided_slice %4 {offsets = [0, 64], sizes = [32, 64], strides = [1, 1]} : vector<32x192xf32> to vector<32x64xf32>
    %13 = arith.truncf %12 : vector<32x64xf32> to vector<32x64xbf16>
    %c0_8 = arith.constant 0 : index
    %c0_9 = arith.constant 0 : index
    %c0_10 = arith.constant 0 : index
    %14 = vector.load %arg5[%c0_8, %c0_9, %c0_10] : memref<1x32x64xbf16, #tpu.memory_space<vmem>>, vector<1x32x64xbf16>
    %15 = vector.shape_cast %14 : vector<1x32x64xbf16> to vector<32x64xbf16>
    %16 = vector.shape_cast %13 : vector<32x64xbf16> to vector<1x32x64xbf16>
    tpu.vector_store %arg5[%c0_8, %c0_9, %c0_10], %16 {strides = array<i32>} : memref<1x32x64xbf16, #tpu.memory_space<vmem>>, vector<1x32x64xbf16>,
    %17 = vector.extract_strided_slice %4 {offsets = [0, 128], sizes = [32, 64], strides = [1, 1]} : vector<32x192xf32> to vector<32x64xf32>
    %18 = arith.truncf %17 : vector<32x64xf32> to vector<32x64xbf16>
    %c0_11 = arith.constant 0 : index
    %c0_12 = arith.constant 0 : index
    %c0_13 = arith.constant 0 : index
    %19 = vector.load %arg6[%c0_11, %c0_12, %c0_13] : memref<1x32x64xbf16, #tpu.memory_space<vmem>>, vector<1x32x64xbf16>
    %20 = vector.shape_cast %19 : vector<1x32x64xbf16> to vector<32x64xbf16>
    %21 = vector.shape_cast %18 : vector<32x64xbf16> to vector<1x32x64xbf16>
    tpu.vector_store %arg6[%c0_11, %c0_12, %c0_13], %21 {strides = array<i32>} : memref<1x32x64xbf16, #tpu.memory_space<vmem>>, vector<1x32x64xbf16>,
    return
  }
  func.func @transform_0(%arg0: i32, %arg1: i32) -> (i32, i32, i32) {
    %c0_i32 = arith.constant 0 : i32
    %c0_i32_0 = arith.constant 0 : i32
    return %arg0, %arg1, %c0_i32 : i32, i32, i32
  }
  func.func @transform_1(%arg0: i32, %arg1: i32) -> (i32, i32) {
    %c0_i32 = arith.constant 0 : i32
    %c0_i32_0 = arith.constant 0 : i32
    %c0_i32_1 = arith.constant 0 : i32
    return %c0_i32, %c0_i32_0 : i32, i32
  }
  func.func @transform_2(%arg0: i32, %arg1: i32) -> (i32, i32, i32) {
    %c0_i32 = arith.constant 0 : i32
    %c0_i32_0 = arith.constant 0 : i32
    return %arg0, %arg1, %c0_i32 : i32, i32, i32
  }
  func.func @transform_3(%arg0: i32, %arg1: i32) -> (i32, i32, i32) {
    %c0_i32 = arith.constant 0 : i32
    %c0_i32_0 = arith.constant 0 : i32
    return %arg0, %arg1, %c0_i32 : i32, i32, i32
  }
  func.func @transform_4(%arg0: i32, %arg1: i32) -> (i32, i32, i32) {
    %c0_i32 = arith.constant 0 : i32
    %c0_i32_0 = arith.constant 0 : i32
    return %arg0, %arg1, %c0_i32 : i32, i32, i32
  }
}

</mosaic_0001>

<llo_original>
// kernel: tpu_custom_call.1
$region0: #{tpu_custom_call.1}
  #allocation0 [shape = 'u32[]', space=smem, size = 0x4, offset = 0x4, fixed_abs, tag = 'smem constant byte address 0x4 - core index']
  #allocation1 [shape = 'u32[72,128]{1,0:T(1,128)}', space=vmem, size = 0x9000, scoped, tag = 'internal scratch']
  %s0 = inlined_call_operand.hbm [shape: f32[2,32,64], index: 0, kind: input, shape index: {}]
  %s1 = inlined_call_operand.hbm [shape: bf16[64,192], index: 1, kind: input, shape index: {}]
  %s2 = inlined_call_operand.hbm [shape: bf16[2,32,64], index: 2, kind: output, shape index: {0}]
  %s3 = inlined_call_operand.hbm [shape: bf16[2,32,64], index: 3, kind: output, shape index: {1}]
  %s4 = inlined_call_operand.hbm [shape: bf16[2,32,64], index: 4, kind: output, shape index: {2}]
  %5 = xla_tuple %s2, %s3, %s4
  %s6 = sld [smem:[#allocation0]]
  $region65: #{tpu_custom_call.1} parent=0
    _
  %s8 = ssub.s32 1, %s6
  %s9 = scalar_select 0, %s8, %s6
  $region1: #{tpu_custom_call.1} parent=0
    #allocation2 [shape = 'u8[32768]{0}', space=vmem, size = 0x8000, scoped, tag = 'input window, operand 0']
    #allocation3 [shape = 's32[2]{0}', space=sflag, size = 0x8, scoped, tag = 'scoped memory for tpu_custom_call.1']
    #allocation4 [shape = 's32[2]{0}', space=sflag, size = 0x8, scoped, tag = 'scoped memory for tpu_custom_call.1']
    #allocation5 [shape = 'u8[32768]{0}', space=vmem, size = 0x8000, scoped, tag = 'input window, operand 1, single buffered']
    #allocation6 [shape = 's32[1]{0}', space=sflag, size = 0x4, scoped, tag = 'scoped memory for tpu_custom_call.1']
    #allocation7 [shape = 'u8[16384]{0}', space=vmem, size = 0x4000, scoped, tag = 'output window, operand 0']
    #allocation8 [shape = 'u8[16384]{0}', space=vmem, size = 0x4000, scoped, tag = 'output window, operand 1']
    #allocation9 [shape = 's32[2]{0}', space=sflag, size = 0x8, scoped, tag = 'scoped memory for tpu_custom_call.1']
    #allocation10 [shape = 'u8[16384]{0}', space=vmem, size = 0x4000, scoped, tag = 'output window, operand 2']
    %10 = vsyncpa [#allocation3], 0
    %s11 = scalar_lea.sflag [#allocation3], 1
    %12 = vsyncpa %s11, 0
    %13 = vsyncpa [#allocation6], 0
    %14 = vsyncpa [#allocation4], 0
    %s15 = scalar_lea.sflag [#allocation4], 1
    %16 = vsyncpa %s15, 0
    %17 = vsyncpa [#allocation9], 0
    %s18 = scalar_lea.sflag [#allocation9], 1
    %19 = vsyncpa %s18, 0
    loop: start=0, step=1, limit=4
    $region2: #{tpu_custom_call.1} parent=1 // loop_pre_header
      _
    $region3: #{tpu_custom_call.1} parent=1 // loop_header
      %s21 = sphi 0, %s25
      %p22 = scmp.ge.s32.totalorder %s21, 4
      %s28 = sphi 0, %s40
      %s29 = sphi 0, %s36
      %s30 = sphi 0, %s28
      %s31 = sphi 0, %s29
      %s32 = sphi 0, %s30
      %s33 = sphi 0, %s31
      %s45 = sphi 0, %s47
      %s48 = sphi 0, %s45
      %s49 = sphi 0, %s48
      %s65 = sphi 0, %s49
      %s69 = sphi 0, %s69
      %s71 = sphi 0, %s69
      %s72 = sphi 0, %s71
      %s86 = sphi 0, %s72
      %s94 = sphi 0, %s96
      %s97 = sphi 0, %s94
      %s98 = sphi 0, %s97
      %s114 = sphi 0, %s98
      %s122 = sphi 0, %s124
      %s125 = sphi 0, %s122
      %s126 = sphi 0, %s125
      %s142 = sphi 0, %s126
      %s150 = sphi 0, %s152
      %s153 = sphi 0, %s150
      %s154 = sphi 0, %s153
      %s170 = sphi 0, %s154
    $region4: #{tpu_custom_call.1} parent=1 // loop_header_branch
      %24 = sbr.rel (%p22) target = $region8
    $region5: #{tpu_custom_call.1} parent=1 // loop_body
      %s26 = ssub.s32 %s21, 1
      %s27 = ssub.s32 %s21, 2
      %s34 = sadd.s32 1, %s29
      %p35 = scmp.ge.s32.totalorder %s34, 1
      %s36 = scalar_select %p35, 0, %s34
      %s37 = sadd.s32 1, %s28
      %s38 = scalar_select %p35, %s37, %s28
      %p39 = scmp.ge.s32.totalorder %s38, 2
      %s40 = scalar_select %p39, 0, %s38
      %s41 = ssub.s32 %s28, %s40
      %s42 = ssub.s32 %s29, %s36
      %s43 = sor.u32 %s41, %s42
      %p44 = scmp.eq.s32.totalorder %s43, 0
      %s46 = sadd.s32 %s45, 1
      %s47 = scalar_select %p44, %s45, %s46
      %p50 = pneg %p44
      %p51 = scmp.eq.s32.totalorder %s21, 1
      %p52 = por %p50, %p51
      %p53 = scmp.ne.s32.totalorder %s45, %s48
      %p54 = scmp.eq.s32.totalorder %s21, 0
      %p55 = por %p53, %p54
      %p56 = scmp.ne.s32.totalorder %s45, %s48
      %p57 = scmp.eq.s32.totalorder %s26, 1
      %p58 = por %p56, %p57
      %p59 = scmp.ne.s32.totalorder %s48, %s49
      %p60 = scmp.eq.s32.totalorder %s26, 0
      %p61 = por %p59, %p60
      %p62 = scmp.ne.s32.totalorder %s48, %s49
      %p63 = scmp.eq.s32.totalorder %s27, 1
      %p64 = por %p62, %p63
      %p66 = scmp.ne.s32.totalorder %s49, %s65
      %p67 = scmp.eq.s32.totalorder %s27, 0
      %p68 = por %p66, %p67
      %s70 = sadd.s32 %s69, 1
      %p73 = scmp.eq.s32.totalorder %s21, 1
      %p74 = scmp.ne.s32.totalorder %s69, %s71
      %p75 = scmp.eq.s32.totalorder %s21, 0
      %p76 = por %p74, %p75
      %p77 = scmp.ne.s32.totalorder %s69, %s71
      %p78 = scmp.eq.s32.totalorder %s26, 1
      %p79 = por %p77, %p78
      %p80 = scmp.ne.s32.totalorder %s71, %s72
      %p81 = scmp.eq.s32.totalorder %s26, 0
      %p82 = por %p80, %p81
      %p83 = scmp.ne.s32.totalorder %s71, %s72
      %p84 = scmp.eq.s32.totalorder %s27, 1
      %p85 = por %p83, %p84
      %p87 = scmp.ne.s32.totalorder %s72, %s86
      %p88 = scmp.eq.s32.totalorder %s27, 0
      %p89 = por %p87, %p88
      %s90 = ssub.s32 %s28, %s40
      %s91 = ssub.s32 %s29, %s36
      %s92 = sor.u32 %s90, %s91
      %p93 = scmp.eq.s32.totalorder %s92, 0
      %s95 = sadd.s32 %s94, 1
      %s96 = scalar_select %p93, %s94, %s95
      %p99 = pneg %p93
      %p100 = scmp.eq.s32.totalorder %s21, 1
      %p101 = por %p99, %p100
      %p102 = scmp.ne.s32.totalorder %s94, %s97
      %p103 = scmp.eq.s32.totalorder %s21, 0
      %p104 = por %p102, %p103
      %p105 = scmp.ne.s32.totalorder %s94, %s97
      %p106 = scmp.eq.s32.totalorder %s26, 1
      %p107 = por %p105, %p106
      %p108 = scmp.ne.s32.totalorder %s97, %s98
      %p109 = scmp.eq.s32.totalorder %s26, 0
      %p110 = por %p108, %p109
      %p111 = scmp.ne.s32.totalorder %s97, %s98
      %p112 = scmp.eq.s32.totalorder %s27, 1
      %p113 = por %p111, %p112
      %p115 = scmp.ne.s32.totalorder %s98, %s114
      %p116 = scmp.eq.s32.totalorder %s27, 0
      %p117 = por %p115, %p116
      %s118 = ssub.s32 %s28, %s40
      %s119 = ssub.s32 %s29, %s36
      %s120 = sor.u32 %s118, %s119
      %p121 = scmp.eq.s32.totalorder %s120, 0
      %s123 = sadd.s32 %s122, 1
      %s124 = scalar_select %p121, %s122, %s123
      %p127 = pneg %p121
      %p128 = scmp.eq.s32.totalorder %s21, 1
      %p129 = por %p127, %p128
      %p130 = scmp.ne.s32.totalorder %s122, %s125
      %p131 = scmp.eq.s32.totalorder %s21, 0
      %p132 = por %p130, %p131
      %p133 = scmp.ne.s32.totalorder %s122, %s125
      %p134 = scmp.eq.s32.totalorder %s26, 1
      %p135 = por %p133, %p134
      %p136 = scmp.ne.s32.totalorder %s125, %s126
      %p137 = scmp.eq.s32.totalorder %s26, 0
      %p138 = por %p136, %p137
      %p139 = scmp.ne.s32.totalorder %s125, %s126
      %p140 = scmp.eq.s32.totalorder %s27, 1
      %p141 = por %p139, %p140
      %p143 = scmp.ne.s32.totalorder %s126, %s142
      %p144 = scmp.eq.s32.totalorder %s27, 0
      %p145 = por %p143, %p144
      %s146 = ssub.s32 %s28, %s40
      %s147 = ssub.s32 %s29, %s36
      %s148 = sor.u32 %s146, %s147
      %p149 = scmp.eq.s32.totalorder %s148, 0
      %s151 = sadd.s32 %s150, 1
      %s152 = scalar_select %p149, %s150, %s151
      %p155 = pneg %p149
      %p156 = scmp.eq.s32.totalorder %s21, 1
      %p157 = por %p155, %p156
      %p158 = scmp.ne.s32.totalorder %s150, %s153
      %p159 = scmp.eq.s32.totalorder %s21, 0
      %p160 = por %p158, %p159
      %p161 = scmp.ne.s32.totalorder %s150, %s153
      %p162 = scmp.eq.s32.totalorder %s26, 1
      %p163 = por %p161, %p162
      %p164 = scmp.ne.s32.totalorder %s153, %s154
      %p165 = scmp.eq.s32.totalorder %s26, 0
      %p166 = por %p164, %p165
      %p167 = scmp.ne.s32.totalorder %s153, %s154
      %p168 = scmp.eq.s32.totalorder %s27, 1
      %p169 = por %p167, %p168
      %p171 = scmp.ne.s32.totalorder %s154, %s170
      %p172 = scmp.eq.s32.totalorder %s27, 0
      %p173 = por %p171, %p172
      %p174 = scmp.le.s32.totalorder 1, %s21
      %p175 = scmp.lt.s32.totalorder %s21, 3
      %p176 = pnand %p174, %p175
      %p177 = pneg %p176
      // Predicated region
      $region9: #{tpu_custom_call.1} parent=5 // pred_check
        _
      $region10: #{tpu_custom_call.1} parent=5 // pred_check_branch
        %179 = sbr.rel (%p176) target = $region12
      $region11: #{tpu_custom_call.1} parent=5 // pred_region
        %s180 = ssub.s32 %s21, 1
        // Predicated region
        $region13: #{tpu_custom_call.1} parent=11 // pred_check
          %p181 = pneg %p82
        $region14: #{tpu_custom_call.1} parent=11 // pred_check_branch
          %183 = sbr.rel (%p181) target = $region16
        $region15: #{tpu_custom_call.1} parent=11 // pred_region
          %185 = vsyncadd [#allocation6], 0
          %s186 = sshll.u32 %s1, 4
          %s187 = int_to_ptr.hbm [resolvable:$true] %s186
          %s188 = sshll.u32 [#allocation5], 4
          %s189 = int_to_ptr.vmem [resolvable:$true] %s188
          %194 = dma.hbm_to_vmem [thread:$0]  %s187, 1024, %s189, [#allocation6], 128, 128, 8
        $region16: #{tpu_custom_call.1} parent=11 // pred_fallthru
          _
      $region12: #{tpu_custom_call.1} parent=5 // pred_fallthru
        _
      %p195 = scmp.lt.s32.totalorder %s21, 2
      // Predicated region
      $region17: #{tpu_custom_call.1} parent=5 // pred_check
        %p196 = pneg %p195
      $region18: #{tpu_custom_call.1} parent=5 // pred_check_branch
        %198 = sbr.rel (%p196) target = $region20
      $region19: #{tpu_custom_call.1} parent=5 // pred_region
        // Predicated region
        $region21: #{tpu_custom_call.1} parent=19 // pred_check
          %p199 = pneg %p55
        $region22: #{tpu_custom_call.1} parent=19 // pred_check_branch
          %201 = sbr.rel (%p199) target = $region24
        $region23: #{tpu_custom_call.1} parent=19 // pred_region
          %s202 = sand.u32 %s45, 1
          %s203 = scalar_lea.sflag [#allocation3], %s202
          %s204 = sand.u32 %s45, 1
          %s205 = smul.addr %s204, 32
          %s206 = scalar_lea.vmem [#allocation2], %s205
          %s207 = smul.u32 4, %s29
          %209 = vsyncadd %s203, 0
          %s210 = smul.addr %s28, 4
          %s211 = sadd.s32 %s207, %s210
          %s212 = smul.addr %s211, 8
          %s213 = scalar_lea.hbm %s0, %s212
          %s214 = sshll.u32 %s213, 4
          %s215 = int_to_ptr.hbm [resolvable:$true] %s214
          %s216 = sshll.u32 %s206, 4
          %s217 = int_to_ptr.vmem [resolvable:$true] %s216
          %222 = dma.hbm_to_vmem [thread:$0]  %s215, 512, %s217, %s203, 128, 128, 8
        $region24: #{tpu_custom_call.1} parent=19 // pred_fallthru
          _
      $region20: #{tpu_custom_call.1} parent=5 // pred_fallthru
        _
      %p223 = scmp.le.s32.totalorder 1, %s21
      %p224 = scmp.lt.s32.totalorder %s21, 3
      %p225 = pnand %p223, %p224
      %p226 = pneg %p225
      // Predicated region
      $region25: #{tpu_custom_call.1} parent=5 // pred_check
        _
      $region26: #{tpu_custom_call.1} parent=5 // pred_check_branch
        %228 = sbr.rel (%p225) target = $region28
      $region27: #{tpu_custom_call.1} parent=5 // pred_region
        %s229 = ssub.s32 %s21, 1
        %s230 = sand.u32 %s48, 1
        %s231 = scalar_lea.sflag [#allocation3], %s230
        %s232 = sand.u32 %s48, 1
        %s233 = smul.addr %s232, 32
        %s234 = scalar_lea.vmem [#allocation2], %s233
        // Predicated region
        $region29: #{tpu_custom_call.1} parent=27 // pred_check
          %p235 = pneg %p61
        $region30: #{tpu_custom_call.1} parent=27 // pred_check_branch
          %237 = sbr.rel (%p235) target = $region32
        $region31: #{tpu_custom_call.1} parent=27 // pred_region
          %239 = dma.done %s231, 512
        $region32: #{tpu_custom_call.1} parent=27 // pred_fallthru
          _
        // Predicated region
        $region33: #{tpu_custom_call.1} parent=27 // pred_check
          %p240 = pneg %p82
        $region34: #{tpu_custom_call.1} parent=27 // pred_check_branch
          %242 = sbr.rel (%p240) target = $region36
        $region35: #{tpu_custom_call.1} parent=27 // pred_region
          %244 = dma.done [#allocation6], 1024
        $region36: #{tpu_custom_call.1} parent=27 // pred_fallthru
          _
        %s245 = sand.u32 %s48, 1
        %s246 = scalar_lea.sflag [#allocation3], %s245
        %s247 = sand.u32 %s48, 1
        %s248 = smul.addr %s247, 32
        %s249 = scalar_lea.vmem [#allocation2], %s248
        %p250 = pneg %p61
        %p251 = pneg %p58
        %p252 = pneg %p82
        %p253 = pneg %p79
        %p254 = pneg %p110
        %p255 = pneg %p107
        %s256 = sand.u32 %s97, 1
        %s257 = scalar_lea.sflag [#allocation4], %s256
        %s258 = sand.u32 %s97, 1
        %s259 = smul.addr %s258, 16
        %s260 = scalar_lea.vmem [#allocation7], %s259
        %p261 = pneg %p138
        %p262 = pneg %p135
        %s263 = sand.u32 %s26, 1
        %s264 = scalar_lea.sflag [#allocation9], %s263
        %s265 = sand.u32 %s125, 1
        %s266 = smul.addr %s265, 16
        %s267 = scalar_lea.vmem [#allocation8], %s266
        %p268 = pneg %p166
        %p269 = pneg %p163
        %s270 = sand.u32 %s26, 1
        %s271 = scalar_lea.sflag [#allocation9], %s270
        %s272 = sand.u32 %s153, 1
        %s273 = smul.addr %s272, 16
        %s274 = scalar_lea.vmem [#allocation10], %s273
        %s275 = smul.u32 4, %s31
        %s276 = smul.u32 4, %s31
        %s277 = smul.u32 4, %s31
        %s278 = smul.u32 4, %s31
        %v280 = vld [vmem:[%s234] sm:$0xff]
        %v281 = vld [vmem:[%s234 + $0x8] sm:$0xff]
        %v282 = vld [vmem:[%s234 + $0x10] sm:$0xff]
        %v283 = vld [vmem:[%s234 + $0x18] sm:$0xff]
        %v284 = vpack.c.bf16 %v281, %v280
        %v285 = vpack.c.bf16 %v283, %v282
        %v286 = vld [vmem:[#allocation5] sm:$0xff]
        %v287 = vld [vmem:[#allocation5 + $0x8] sm:$0xff]
        %v288 = vld [vmem:[#allocation5 + $0x10] sm:$0xff]
        %v289 = vld [vmem:[#allocation5 + $0x18] sm:$0xff]
        %v290 = vld [vmem:[#allocation5 + $0x20] sm:$0xff]
        %v291 = vld [vmem:[#allocation5 + $0x28] sm:$0xff]
        %v292 = vld [vmem:[#allocation5 + $0x30] sm:$0xff]
        %v293 = vld [vmem:[#allocation5 + $0x38] sm:$0xff]
        %v302 = vunpack.c.l.b16 %v286
        %v303 = vunpack.c.h.b16 %v286
        %v304 = vunpack.c.l.b16 %v287
        %v305 = vunpack.c.h.b16 %v287
        %v306 = vunpack.c.l.b16 %v288
        %v307 = vunpack.c.h.b16 %v288
        %v308 = vunpack.c.l.b16 %v289
        %v309 = vunpack.c.h.b16 %v289
        %v310 = vunpack.c.l.b16 %v290
        %v311 = vunpack.c.h.b16 %v290
        %v312 = vunpack.c.l.b16 %v291
        %v313 = vunpack.c.h.b16 %v291
        %v314 = vunpack.c.l.b16 %v292
        %v315 = vunpack.c.h.b16 %v292
        %v316 = vunpack.c.l.b16 %v293
        %v317 = vunpack.c.h.b16 %v293
        %v318 = vpack.c.b16 %v304, %v302
        %v319 = vpack.c.b16 %v305, %v303
        %v320 = vpack.c.b16 %v308, %v306
        %v321 = vpack.c.b16 %v309, %v307
        %v322 = vpack.c.b16 %v312, %v310
        %v323 = vpack.c.b16 %v313, %v311
        %v324 = vpack.c.b16 %v316, %v314
        %v325 = vpack.c.b16 %v317, %v315
        %vm334 = vcmask 523264
        %v336 = vsel %vm334, %v284, 0
        %v339 = vsel %vm334, %v285, 0
        %341 = vmatpush.bf16.msra.mxu0 0
        %342 = vmatpush.bf16.msra.mxu0 0
        %343 = vmatpush.bf16.msra.mxu0 0
        %344 = vmatpush.bf16.msra.mxu0 0
        %345 = vmatpush.bf16.msra.mxu0 %v324
        %346 = vmatpush.bf16.msra.mxu0 %v322
        %347 = vmatpush.bf16.msra.mxu0 %v320
        %348 = vmatpush.bf16.msra.mxu0 %v318
        %349 = vmatmul.bf16.gmra.mxu0 %v336
        %v350 = vpop.f32.mrf.mxu0
        %v351 = vadd.f32 0.0, %v350
        %v352 = vpop.f32.mrf.mxu0
        %v353 = vadd.f32 0.0, %v352
        %354 = vmatmul.bf16.gmra.mxu0 %v339
        %v355 = vpop.f32.mrf.mxu0
        %v356 = vadd.f32 0.0, %v355
        %v357 = vpop.f32.mrf.mxu0
        %v358 = vadd.f32 0.0, %v357
        %359 = vdwg.mxu0
        %360 = vmatpush.bf16.msra.mxu0 0
        %361 = vmatpush.bf16.msra.mxu0 0
        %362 = vmatpush.bf16.msra.mxu0 0
        %363 = vmatpush.bf16.msra.mxu0 0
        %364 = vmatpush.bf16.msra.mxu0 %v325
        %365 = vmatpush.bf16.msra.mxu0 %v323
        %366 = vmatpush.bf16.msra.mxu0 %v321
        %367 = vmatpush.bf16.msra.mxu0 %v319
        %368 = vmatmul.bf16.gmra.mxu0 %v336
        %v369 = vpop.f32.mrf.mxu0
        %v370 = vadd.f32 0.0, %v369
        %v371 = vpop.f32.mrf.mxu0
        %v372 = vadd.f32 0.0, %v371
        %373 = vmatmul.bf16.gmra.mxu0 %v339
        %v374 = vpop.f32.mrf.mxu0
        %v375 = vadd.f32 0.0, %v374
        %v376 = vpop.f32.mrf.mxu0
        %v377 = vadd.f32 0.0, %v376
        %378 = vdwg.mxu0
        %v379 = vmul.f32 %v351, 0.125
        %v380 = vmul.f32 %v353, 0.125
        %v381 = vmul.f32 %v356, 0.125
        %v382 = vmul.f32 %v358, 0.125
        %v383 = vpack.c.bf16 %v379, %v379
        %v384 = vpack.c.bf16 %v380, %v380
        %v385 = vpack.c.bf16 %v381, %v381
        %v386 = vpack.c.bf16 %v382, %v382
        %vm387 = vcmask 519168
        %388 = vst.msk [vmem:[%s260] sm:$0xf] %vm387, %v383
        %389 = vst.msk [vmem:[%s260 + $0x4] sm:$0xf] %vm387, %v384
        %390 = vst.msk [vmem:[%s260 + $0x8] sm:$0xf] %vm387, %v385
        %391 = vst.msk [vmem:[%s260 + $0xc] sm:$0xf] %vm387, %v386
        %v392 = vpack.c.bf16 %v351, %v351
        %v393 = vpack.c.bf16 %v353, %v353
        %v394 = vpack.c.bf16 %v356, %v356
        %v395 = vpack.c.bf16 %v358, %v358
        %400 = vrot.lane.b32.xlu0 %v392, 64
        %v401 = vpop.permute.xlu0 %400
        %402 = vrot.lane.b32.xlu0 %v393, 64
        %v403 = vpop.permute.xlu0 %402
        %404 = vrot.lane.b32.xlu0 %v394, 64
        %v405 = vpop.permute.xlu0 %404
        %406 = vrot.lane.b32.xlu0 %v395, 64
        %v407 = vpop.permute.xlu0 %406
        %412 = vst.msk [vmem:[%s267] sm:$0xf] %vm387, %v401
        %413 = vst.msk [vmem:[%s267 + $0x4] sm:$0xf] %vm387, %v403
        %414 = vst.msk [vmem:[%s267 + $0x8] sm:$0xf] %vm387, %v405
        %415 = vst.msk [vmem:[%s267 + $0xc] sm:$0xf] %vm387, %v407
        %v416 = vpack.c.bf16 %v370, %v370
        %v417 = vpack.c.bf16 %v372, %v372
        %v418 = vpack.c.bf16 %v375, %v375
        %v419 = vpack.c.bf16 %v377, %v377
        %420 = vst.msk [vmem:[%s274] sm:$0xf] %vm387, %v416
        %421 = vst.msk [vmem:[%s274 + $0x4] sm:$0xf] %vm387, %v417
        %422 = vst.msk [vmem:[%s274 + $0x8] sm:$0xf] %vm387, %v418
        %423 = vst.msk [vmem:[%s274 + $0xc] sm:$0xf] %vm387, %v419
        %s424 = sand.u32 %s97, 1
        %s425 = scalar_lea.sflag [#allocation4], %s424
        %s426 = sand.u32 %s97, 1
        %s427 = smul.addr %s426, 16
        %s428 = scalar_lea.vmem [#allocation7], %s427
        %s429 = sand.u32 %s26, 1
        %s430 = scalar_lea.sflag [#allocation9], %s429
        %s431 = sand.u32 %s125, 1
        %s432 = smul.addr %s431, 16
        %s433 = scalar_lea.vmem [#allocation8], %s432
        %s434 = sand.u32 %s26, 1
        %s435 = scalar_lea.sflag [#allocation9], %s434
        %s436 = sand.u32 %s153, 1
        %s437 = smul.addr %s436, 16
        %s438 = scalar_lea.vmem [#allocation10], %s437
        // Predicated region
        $region37: #{tpu_custom_call.1} parent=27 // pred_check
          %p439 = pneg %p107
        $region38: #{tpu_custom_call.1} parent=27 // pred_check_branch
          %441 = sbr.rel (%p439) target = $region40
        $region39: #{tpu_custom_call.1} parent=27 // pred_region
          %s442 = smul.u32 4, %s31
          %444 = vsyncadd %s425, 0
          %s445 = smul.addr %s30, 4
          %s446 = sadd.s32 %s442, %s445
          %s447 = smul.addr %s446, 4
          %s448 = scalar_lea.hbm %s2, %s447
          %s449 = sshll.u32 %s428, 4
          %s450 = int_to_ptr.vmem [resolvable:$true] %s449
          %s451 = sshll.u32 %s448, 4
          %s452 = int_to_ptr.hbm [resolvable:$true] %s451
          %457 = dma.vmem_to_hbm [thread:$0]  %s450, 256, %s452, %s425, 64, 64, 4
        $region40: #{tpu_custom_call.1} parent=27 // pred_fallthru
          _
        // Predicated region
        $region41: #{tpu_custom_call.1} parent=27 // pred_check
          %p458 = pneg %p135
        $region42: #{tpu_custom_call.1} parent=27 // pred_check_branch
          %460 = sbr.rel (%p458) target = $region44
        $region43: #{tpu_custom_call.1} parent=27 // pred_region
          %s461 = smul.u32 4, %s31
          %463 = vsyncadd %s430, 0
          %s464 = smul.addr %s30, 4
          %s465 = sadd.s32 %s461, %s464
          %s466 = smul.addr %s465, 4
          %s467 = scalar_lea.hbm %s3, %s466
          %s468 = sshll.u32 %s433, 4
          %s469 = int_to_ptr.vmem [resolvable:$true] %s468
          %s470 = sshll.u32 %s467, 4
          %s471 = int_to_ptr.hbm [resolvable:$true] %s470
          %476 = dma.vmem_to_hbm [thread:$0]  %s469, 256, %s471, %s430, 64, 64, 4
        $region44: #{tpu_custom_call.1} parent=27 // pred_fallthru
          _
        // Predicated region
        $region45: #{tpu_custom_call.1} parent=27 // pred_check
          %p477 = pneg %p163
        $region46: #{tpu_custom_call.1} parent=27 // pred_check_branch
          %479 = sbr.rel (%p477) target = $region48
        $region47: #{tpu_custom_call.1} parent=27 // pred_region
          %s480 = smul.u32 4, %s31
          %482 = vsyncadd %s435, 0
          %s483 = smul.addr %s30, 4
          %s484 = sadd.s32 %s480, %s483
          %s485 = smul.addr %s484, 4
          %s486 = scalar_lea.hbm %s4, %s485
          %s487 = sshll.u32 %s438, 4
          %s488 = int_to_ptr.vmem [resolvable:$true] %s487
          %s489 = sshll.u32 %s486, 4
          %s490 = int_to_ptr.hbm [resolvable:$true] %s489
          %495 = dma.vmem_to_hbm [thread:$0]  %s488, 256, %s490, %s435, 64, 64, 4
        $region48: #{tpu_custom_call.1} parent=27 // pred_fallthru
          _
      $region28: #{tpu_custom_call.1} parent=5 // pred_fallthru
        _
      %p496 = scmp.le.s32.totalorder 2, %s21
      // Predicated region
      $region49: #{tpu_custom_call.1} parent=5 // pred_check
        %p497 = pneg %p496
      $region50: #{tpu_custom_call.1} parent=5 // pred_check_branch
        %499 = sbr.rel (%p497) target = $region52
      $region51: #{tpu_custom_call.1} parent=5 // pred_region
        %s500 = ssub.s32 %s21, 2
        // Predicated region
        $region53: #{tpu_custom_call.1} parent=51 // pred_check
          %p501 = pneg %p113
        $region54: #{tpu_custom_call.1} parent=51 // pred_check_branch
          %503 = sbr.rel (%p501) target = $region56
        $region55: #{tpu_custom_call.1} parent=51 // pred_region
          %s504 = sand.u32 %s98, 1
          %s505 = scalar_lea.sflag [#allocation4], %s504
          %s506 = sand.u32 %s98, 1
          %s507 = smul.addr %s506, 16
          %s508 = scalar_lea.vmem [#allocation7], %s507
          %510 = dma.done %s505, 256
        $region56: #{tpu_custom_call.1} parent=51 // pred_fallthru
          _
        // Predicated region
        $region57: #{tpu_custom_call.1} parent=51 // pred_check
          %p511 = pneg %p141
        $region58: #{tpu_custom_call.1} parent=51 // pred_check_branch
          %513 = sbr.rel (%p511) target = $region60
        $region59: #{tpu_custom_call.1} parent=51 // pred_region
          %s514 = sand.u32 %s27, 1
          %s515 = scalar_lea.sflag [#allocation9], %s514
          %s516 = sand.u32 %s126, 1
          %s517 = smul.addr %s516, 16
          %s518 = scalar_lea.vmem [#allocation8], %s517
          %520 = dma.done %s515, 256
        $region60: #{tpu_custom_call.1} parent=51 // pred_fallthru
          _
        // Predicated region
        $region61: #{tpu_custom_call.1} parent=51 // pred_check
          %p521 = pneg %p169
        $region62: #{tpu_custom_call.1} parent=51 // pred_check_branch
          %523 = sbr.rel (%p521) target = $region64
        $region63: #{tpu_custom_call.1} parent=51 // pred_region
          %s524 = sand.u32 %s27, 1
          %s525 = scalar_lea.sflag [#allocation9], %s524
          %s526 = sand.u32 %s154, 1
          %s527 = smul.addr %s526, 16
          %s528 = scalar_lea.vmem [#allocation10], %s527
          %530 = dma.done %s525, 256
        $region64: #{tpu_custom_call.1} parent=51 // pred_fallthru
          _
      $region52: #{tpu_custom_call.1} parent=5 // pred_fallthru
        _
    $region6: #{tpu_custom_call.1} parent=1 // loop_footer
      %s25 = sadd.s32 1, %s21
    $region7: #{tpu_custom_call.1} parent=1 // loop_footer_branch
      %20 = sbr.rel target = $region3
    $region8: #{tpu_custom_call.1} parent=1 // loop_exit
      _
    %531 = vsyncpa [#allocation3], 1
    %s532 = scalar_lea.sflag [#allocation3], 1
    %533 = vsyncpa %s532, 1
    %534 = vsyncpa [#allocation6], 1
    %535 = vsyncpa [#allocation4], 1
    %s536 = scalar_lea.sflag [#allocation4], 1
    %537 = vsyncpa %s536, 1
    %538 = vsyncpa [#allocation9], 1
    %s539 = scalar_lea.sflag [#allocation9], 1
    %540 = vsyncpa %s539, 1

</llo_original>
